<compile_context>
chip_gen: v7x
topology: tpu7x:2x2x1
jax: 0.10.0
libtpu: 0.0.40
codegen_flags: <defaults>
</compile_context>

<pallas_src>
import functools

import jax
import jax.numpy as jnp
from jax import lax
from jax.experimental import pallas as pl
from jax.experimental.pallas import tpu as pltpu

EMBEDDING_DIM = 32
COS_EPS = 1e-8                        # torch F.cosine_similarity default eps
_COS_EPS_SQ = COS_EPS * COS_EPS
DEFAULT_TILE_B = 16384                # batch tile on the 128-wide lane axis
_GATHER_TILE_B_CAP = 8192             # bounds in-kernel gather temporaries (~10 MiB)
_MIN_GRID_STEPS = 4                   # keep both v7x TensorCores fed on big batches
# Whole-table-in-VMEM budget, sized against v7x (64 MiB physical VMEM = tightest
# generation); v5e/v6e have 128 MiB and therefore ~2x more headroom.
VMEM_TABLE_BUDGET_BYTES = 40 * 1024 * 1024


def _round_up(x, m):
    return ((x + m - 1) // m) * m


def _pick_tile(batch, tile_b):
    """Lane-aligned batch tile; >= _MIN_GRID_STEPS grid steps for large batches."""
    if batch <= tile_b and batch < _MIN_GRID_STEPS * 128:
        return batch                              # single full block (always legal)
    n_steps = max(_MIN_GRID_STEPS, pl.cdiv(batch, tile_b))
    tb = _round_up(pl.cdiv(batch, n_steps), 128)  # multiple of 128 -> legal block
    return max(128, min(tb, tile_b))


# --------------------------------------------------------------------------- #
# Kernels
# --------------------------------------------------------------------------- #
def _mf_bias_gather_kernel(uidx_ref, midx_ref, uemb_ref, memb_ref,
                           ubias_ref, mbias_ref, o_ref):
    """In-kernel embedding gather + cosine similarity + biases (all in VMEM).

    uidx_ref, midx_ref : [1, TB] int32 (per-tile index blocks)
    uemb_ref           : [D, NU]       (whole table, VMEM-resident)
    memb_ref           : [D, NM]
    ubias_ref          : [1, NU]
    mbias_ref          : [1, NM]
    o_ref              : [1, TB] float32
    """
    d = uemb_ref.shape[0]
    tb = uidx_ref.shape[1]

    # Clamp first: padded lanes of a partial final tile hold garbage indices;
    # clamping keeps the lane gather in range and the garbage results are
    # discarded on writeback.
    uidx = jnp.clip(uidx_ref[...], 0, uemb_ref.shape[1] - 1)   # [1, TB]
    midx = jnp.clip(midx_ref[...], 0, memb_ref.shape[1] - 1)

    uidx_d = jnp.broadcast_to(uidx, (d, tb))
    midx_d = jnp.broadcast_to(midx, (d, tb))

    # Lane-axis gathers on VMEM-resident transposed tables: the gathered
    # [D, TB] / [1, TB] slabs live only in VMEM (single HBM trip for tables).
    u = jnp.take_along_axis(uemb_ref[...], uidx_d, axis=1,
                            mode="promise_in_bounds").astype(jnp.float32)
    m = jnp.take_along_axis(memb_ref[...], midx_d, axis=1,
                            mode="promise_in_bounds").astype(jnp.float32)
    ub = jnp.take_along_axis(ubias_ref[...], uidx, axis=1,
                             mode="promise_in_bounds").astype(jnp.float32)
    mb = jnp.take_along_axis(mbias_ref[...], midx, axis=1,
                             mode="promise_in_bounds").astype(jnp.float32)

    dot = jnp.sum(u * m, axis=0, keepdims=True)    # [1, TB] (cheap sublane reduce)
    uu = jnp.sum(u * u, axis=0, keepdims=True)
    mm = jnp.sum(m * m, axis=0, keepdims=True)

    # 1 / (max(||u||, eps) * max(||m||, eps)) with a single fused rsqrt (EUP).
    inv_norm = lax.rsqrt(jnp.maximum(uu, _COS_EPS_SQ) * jnp.maximum(mm, _COS_EPS_SQ))

    o_ref[...] = dot * inv_norm * 2.5 + 2.75 + ub + mb


def _mf_bias_kernel(u_ref, m_ref, bias_ref, o_ref):
    """Pre-gathered fallback: u_ref/m_ref [D, TB]; bias_ref/o_ref [1, TB]."""
    u = u_ref[...].astype(jnp.float32)
    m = m_ref[...].astype(jnp.float32)

    dot = jnp.sum(u * m, axis=0, keepdims=True)
    uu = jnp.sum(u * u, axis=0, keepdims=True)
    mm = jnp.sum(m * m, axis=0, keepdims=True)
    inv_norm = lax.rsqrt(jnp.maximum(uu, _COS_EPS_SQ) * jnp.maximum(mm, _COS_EPS_SQ))

    o_ref[...] = dot * inv_norm * 2.5 + 2.75 + bias_ref[...].astype(jnp.float32)


# --------------------------------------------------------------------------- #
# Wrappers
# --------------------------------------------------------------------------- #
def _forward_in_kernel_gather(params, user_idx, movie_idx, tile_b):
    uemb, memb = params["user_embeds"], params["movie_embeds"]
    ubias, mbias = params["user_biases"], params["movie_biases"]
    d = uemb.shape[0]
    b = user_idx.shape[0]

    tb = _pick_tile(b, min(tile_b, _GATHER_TILE_B_CAP))
    grid = (pl.cdiv(b, tb),)

    uidx = user_idx.astype(jnp.int32).reshape(1, b)
    midx = movie_idx.astype(jnp.int32).reshape(1, b)

    table_bytes = sum(int(t.size) * t.dtype.itemsize for t in (uemb, memb, ubias, mbias))
    # idx/out blocks (double-buffered) + in-kernel f32/int32 temporaries.
    tile_bytes = 3 * 2 * tb * 4 + 10 * d * tb * 4
    vmem_limit = int(max(32 << 20, table_bytes + tile_bytes + (4 << 20)))

    idx_spec = pl.BlockSpec((1, tb), lambda i: (0, i))
    whole_vmem = pl.BlockSpec(memory_space=pltpu.MemorySpace.VMEM)

    out = pl.pallas_call(
        _mf_bias_gather_kernel,
        out_shape=jax.ShapeDtypeStruct((1, b), jnp.float32),
        grid=grid,
        in_specs=[idx_spec, idx_spec, whole_vmem, whole_vmem, whole_vmem, whole_vmem],
        out_specs=pl.BlockSpec((1, tb), lambda i: (0, i)),
        compiler_params=pltpu.CompilerParams(
            dimension_semantics=("parallel",),
            vmem_limit_bytes=vmem_limit,
        ),
    )(uidx, midx, uemb, memb, ubias, mbias)
    return out[0, :]


def _forward_pregathered(params, user_idx, movie_idx, tile_b):
    # Tables too large for VMEM (or in-kernel gather unsupported): XLA gathers
    # outside the kernel.  Transposed tables keep the gathered slabs lane-dense;
    # the two bias streams are merged into one input/DMA.
    user = jnp.take(params["user_embeds"], user_idx, axis=1)            # [D, B]
    movie = jnp.take(params["movie_embeds"], movie_idx, axis=1)         # [D, B]
    bias = (jnp.take(params["user_biases"], user_idx, axis=1)
            + jnp.take(params["movie_biases"], movie_idx, axis=1))      # [1, B]

    d, b = user.shape
    tb = _pick_tile(b, tile_b)
    grid = (pl.cdiv(b, tb),)

    emb_bytes = user.dtype.itemsize
    tile_bytes = 2 * 2 * d * tb * emb_bytes + 2 * 2 * tb * (bias.dtype.itemsize + 4)
    vmem_limit = int(max(32 << 20, tile_bytes + (4 << 20)))   # > v5e's 16 MiB default

    out = pl.pallas_call(
        _mf_bias_kernel,
        out_shape=jax.ShapeDtypeStruct((1, b), jnp.float32),
        grid=grid,
        in_specs=[
            pl.BlockSpec((d, tb), lambda i: (0, i)),
            pl.BlockSpec((d, tb), lambda i: (0, i)),
            pl.BlockSpec((1, tb), lambda i: (0, i)),
        ],
        out_specs=pl.BlockSpec((1, tb), lambda i: (0, i)),
        compiler_params=pltpu.CompilerParams(
            dimension_semantics=("parallel",),
            vmem_limit_bytes=vmem_limit,
        ),
    )(user, movie, bias)
    return out[0, :]


def factorization_bias_forward(params, user_idx, movie_idx, *,
                               tile_b=DEFAULT_TILE_B, in_kernel_gather=None):
    """Forward pass matching FactorizationBias.forward (eval mode).

    params holds TRANSPOSED tables:
      user_embeds  [D, num_users]     movie_embeds [D, num_movies]
      user_biases  [1, num_users]     movie_biases [1, num_movies]
    user_idx, movie_idx: int [B].  Returns f32 [B].
    """
    if in_kernel_gather is None:
        table_bytes = sum(int(params[k].size) * params[k].dtype.itemsize
                          for k in ("user_embeds", "movie_embeds",
                                    "user_biases", "movie_biases"))
        in_kernel_gather = table_bytes <= VMEM_TABLE_BUDGET_BYTES
    if in_kernel_gather:
        return _forward_in_kernel_gather(params, user_idx, movie_idx, tile_b)
    return _forward_pregathered(params, user_idx, movie_idx, tile_b)


def init_params(key, num_users, num_movies, embedding_dim, dtype=jnp.float32):
    # nn.Embedding default init ~ N(0, 1); tables stored transposed (lane-dense).
    # dtype=jnp.bfloat16 halves the dominant HBM stream; kernels accumulate in f32.
    k1, k2, k3, k4 = jax.random.split(key, 4)
    return {
        "user_embeds": jax.random.normal(k1, (embedding_dim, num_users)).astype(dtype),
        "movie_embeds": jax.random.normal(k2, (embedding_dim, num_movies)).astype(dtype),
        "user_biases": jax.random.normal(k3, (1, num_users)).astype(dtype),
        "movie_biases": jax.random.normal(k4, (1, num_movies)).astype(dtype),
    }


if __name__ == "__main__":
    num_users, num_movies = 32, 48
    batch = 8

    key = jax.random.PRNGKey(0)
    pkey, ukey, mkey = jax.random.split(key, 3)

    params = init_params(pkey, num_users, num_movies, EMBEDDING_DIM)
    user_idx = jax.random.randint(ukey, (batch,), 0, num_users, dtype=jnp.int32)
    movie_idx = jax.random.randint(mkey, (batch,), 0, num_movies, dtype=jnp.int32)

    # Prefer the single-HBM-trip in-kernel-gather path; if this Mosaic build cannot
    # lower the in-kernel dynamic gather, fall back to the validated pre-gathered
    # path (identical math, just more HBM traffic).
    pred = None
    try:
        fwd = jax.jit(functools.partial(factorization_bias_forward, in_kernel_gather=True))
        pred = jax.block_until_ready(fwd(params, user_idx, movie_idx))
    except Exception:  # lowering-support probe; fallback below is fully validated
        pred = None
    if pred is None:
        fwd = jax.jit(functools.partial(factorization_bias_forward, in_kernel_gather=False))
        pred = jax.block_until_ready(fwd(params, user_idx, movie_idx))

    # Pure-JAX reference (same semantics as the PyTorch module).
    u = params["user_embeds"][:, user_idx].astype(jnp.float32)
    m = params["movie_embeds"][:, movie_idx].astype(jnp.float32)
    cos = jnp.sum(u * m, axis=0) / (
        jnp.maximum(jnp.linalg.norm(u, axis=0), COS_EPS)
        * jnp.maximum(jnp.linalg.norm(m, axis=0), COS_EPS)
    )
    ref = (cos * 2.5 + 2.75
           + params["user_biases"][0, user_idx].astype(jnp.float32)
           + params["movie_biases"][0, movie_idx].astype(jnp.float32))
    assert jnp.allclose(pred, ref, atol=1e-5, rtol=1e-5), (pred, ref)

    print("KERNEL_OK")
</pallas_src>

<mosaic_0001>
module attributes {stable_mosaic.version = 11 : i64} {
  func.func @_mf_bias_kernel(%arg0: i32, %arg1: memref<32x8xf32, #tpu.memory_space<vmem>>, %arg2: memref<32x8xf32, #tpu.memory_space<vmem>>, %arg3: memref<1x8xf32, #tpu.memory_space<vmem>>, %arg4: memref<1x8xf32, #tpu.memory_space<vmem>>) attributes {dimension_semantics = [#tpu.dimension_semantics<parallel>], iteration_bounds = array<i64: 1>, scalar_prefetch = 0 : i64, scratch_operands = 0 : i64, tpu.core_type = #tpu.core_type<tc>, window_params = [{transform_indices = @transform_0, window_bounds = array<i64: 32, 8>}, {transform_indices = @transform_1, window_bounds = array<i64: 32, 8>}, {transform_indices = @transform_2, window_bounds = array<i64: 1, 8>}, {transform_indices = @transform_3, window_bounds = array<i64: 1, 8>}]} {
    %c0 = arith.constant 0 : index
    %c0_0 = arith.constant 0 : index
    %0 = vector.load %arg1[%c0, %c0_0] : memref<32x8xf32, #tpu.memory_space<vmem>>, vector<32x8xf32>
    %c0_1 = arith.constant 0 : index
    %c0_2 = arith.constant 0 : index
    %1 = vector.load %arg2[%c0_1, %c0_2] : memref<32x8xf32, #tpu.memory_space<vmem>>, vector<32x8xf32>
    %2 = arith.mulf %0, %1 : vector<32x8xf32>
    %cst = arith.constant dense<0.000000e+00> : vector<8xf32>
    %3 = vector.multi_reduction <add>, %2, %cst [0] : vector<32x8xf32> to vector<8xf32>
    %4 = vector.shape_cast %3 : vector<8xf32> to vector<1x8xf32>
    %5 = arith.mulf %0, %0 : vector<32x8xf32>
    %cst_3 = arith.constant dense<0.000000e+00> : vector<8xf32>
    %6 = vector.multi_reduction <add>, %5, %cst_3 [0] : vector<32x8xf32> to vector<8xf32>
    %7 = vector.shape_cast %6 : vector<8xf32> to vector<1x8xf32>
    %8 = arith.mulf %1, %1 : vector<32x8xf32>
    %cst_4 = arith.constant dense<0.000000e+00> : vector<8xf32>
    %9 = vector.multi_reduction <add>, %8, %cst_4 [0] : vector<32x8xf32> to vector<8xf32>
    %10 = vector.shape_cast %9 : vector<8xf32> to vector<1x8xf32>
    %cst_5 = arith.constant 1.000000e-16 : f32
    %11 = vector.broadcast %cst_5 : f32 to vector<1x8xf32>
    %12 = arith.maximumf %7, %11 : vector<1x8xf32>
    %cst_6 = arith.constant 1.000000e-16 : f32
    %13 = vector.broadcast %cst_6 : f32 to vector<1x8xf32>
    %14 = arith.maximumf %10, %13 : vector<1x8xf32>
    %15 = arith.mulf %12, %14 : vector<1x8xf32>
    %16 = math.rsqrt %15 : vector<1x8xf32>
    %17 = arith.mulf %4, %16 : vector<1x8xf32>
    %cst_7 = arith.constant 2.500000e+00 : f32
    %18 = vector.broadcast %cst_7 : f32 to vector<1x8xf32>
    %19 = arith.mulf %17, %18 : vector<1x8xf32>
    %cst_8 = arith.constant 2.750000e+00 : f32
    %20 = vector.broadcast %cst_8 : f32 to vector<1x8xf32>
    %21 = arith.addf %19, %20 : vector<1x8xf32>
    %c0_9 = arith.constant 0 : index
    %c0_10 = arith.constant 0 : index
    %22 = vector.load %arg3[%c0_9, %c0_10] : memref<1x8xf32, #tpu.memory_space<vmem>>, vector<1x8xf32>
    %23 = arith.addf %21, %22 : vector<1x8xf32>
    %c0_11 = arith.constant 0 : index
    %c0_12 = arith.constant 0 : index
    %24 = vector.load %arg4[%c0_11, %c0_12] : memref<1x8xf32, #tpu.memory_space<vmem>>, vector<1x8xf32>
    tpu.vector_store %arg4[%c0_11, %c0_12], %23 {strides = array<i32>} : memref<1x8xf32, #tpu.memory_space<vmem>>, vector<1x8xf32>,
    return
  }
  func.func @transform_0(%arg0: i32) -> (i32, i32) {
    %c0_i32 = arith.constant 0 : i32
    %c0_i32_0 = arith.constant 0 : i32
    return %c0_i32, %arg0 : i32, i32
  }
  func.func @transform_1(%arg0: i32) -> (i32, i32) {
    %c0_i32 = arith.constant 0 : i32
    %c0_i32_0 = arith.constant 0 : i32
    return %c0_i32, %arg0 : i32, i32
  }
  func.func @transform_2(%arg0: i32) -> (i32, i32) {
    %c0_i32 = arith.constant 0 : i32
    %c0_i32_0 = arith.constant 0 : i32
    return %c0_i32, %arg0 : i32, i32
  }
  func.func @transform_3(%arg0: i32) -> (i32, i32) {
    %c0_i32 = arith.constant 0 : i32
    %c0_i32_0 = arith.constant 0 : i32
    return %c0_i32, %arg0 : i32, i32
  }
}

</mosaic_0001>

<llo_original>
// kernel: factorization_bias_forward.1
$region0: #{factorization_bias_forward.1}
  #allocation0 [shape = 'u32[]', space=smem, size = 0x4, offset = 0x4, fixed_abs, tag = 'smem constant byte address 0x4 - core index']
  #allocation1 [shape = 'u32[144,128]{1,0:T(1,128)}', space=vmem, size = 0x12000, scoped, tag = 'internal scratch']
  %s0 = inlined_call_operand.vmem [shape: f32[32,8], index: 0, kind: input, shape index: {}]
  %s1 = inlined_call_operand.vmem [shape: f32[32,8], index: 1, kind: input, shape index: {}]
  %s2 = inlined_call_operand.vmem [shape: f32[1,8], index: 2, kind: input, shape index: {}]
  %s3 = inlined_call_operand.hbm [shape: f32[1,8], index: 3, kind: output, shape index: {}]
  %s4 = sld [smem:[#allocation0]]
  $region22: #{factorization_bias_forward.1} parent=0
    _
  %s6 = ssub.s32 1, %s4
  %s7 = scalar_select 0, %s6, %s4
  $region1: #{factorization_bias_forward.1} parent=0
    #allocation2 [shape = 'u8[512]{0}', space=vmem, size = 0x400, scoped, tag = 'output window, operand 0, single buffered']
    #allocation3 [shape = 's32[1]{0}', space=sflag, size = 0x4, scoped, tag = 'scoped memory for factorization_bias_forward.1']
    %8 = vsyncpa [#allocation3], 0
    // Predicated region
    $region2: #{factorization_bias_forward.1} parent=1 // pred_check
      _
    $region3: #{factorization_bias_forward.1} parent=1 // pred_check_branch
      %10 = sbr.rel (0) target = $region5
    $region4: #{factorization_bias_forward.1} parent=1 // pred_region
      _
    $region5: #{factorization_bias_forward.1} parent=1 // pred_fallthru
      _
    // Predicated region
    $region6: #{factorization_bias_forward.1} parent=1 // pred_check
      _
    $region7: #{factorization_bias_forward.1} parent=1 // pred_check_branch
      %12 = sbr.rel (0) target = $region9
    $region8: #{factorization_bias_forward.1} parent=1 // pred_region
      _
    $region9: #{factorization_bias_forward.1} parent=1 // pred_fallthru
      _
    // Predicated region
    $region10: #{factorization_bias_forward.1} parent=1 // pred_check
      _
    $region11: #{factorization_bias_forward.1} parent=1 // pred_check_branch
      %14 = sbr.rel (0) target = $region13
    $region12: #{factorization_bias_forward.1} parent=1 // pred_region
      _
    $region13: #{factorization_bias_forward.1} parent=1 // pred_fallthru
      _
    %v15 = vld [vmem:[%s0] sm:$0xff]
    %v16 = vld [vmem:[%s0 + $0x8] sm:$0xff]
    %v17 = vld [vmem:[%s0 + $0x10] sm:$0xff]
    %v18 = vld [vmem:[%s0 + $0x18] sm:$0xff]
    %v19 = vld [vmem:[%s1] sm:$0xff]
    %v20 = vld [vmem:[%s1 + $0x8] sm:$0xff]
    %v21 = vld [vmem:[%s1 + $0x10] sm:$0xff]
    %v22 = vld [vmem:[%s1 + $0x18] sm:$0xff]
    %v23 = vmul.f32 %v15, %v19
    %v24 = vmul.f32 %v16, %v20
    %v25 = vmul.f32 %v17, %v21
    %v26 = vmul.f32 %v18, %v22
    %vm27 = vcmask 64512
    %v28 = vsel %vm27, %v23, 0.0
    %v29 = vsel %vm27, %v24, 0.0
    %v30 = vadd.f32 %v28, %v29
    %v31 = vsel %vm27, %v25, 0.0
    %v32 = vadd.f32 %v30, %v31
    %v33 = vsel %vm27, %v26, 0.0
    %v34 = vadd.f32 %v32, %v33
    %v35 = vrot.slane %v34, 4
    %v36 = vadd.f32 %v34, %v35
    %v37 = vrot.slane %v36, 2
    %v38 = vadd.f32 %v36, %v37
    %v39 = vrot.slane %v38, 1
    %v40 = vadd.f32 %v38, %v39
    %v41 = vmul.f32 %v15, %v15
    %v42 = vmul.f32 %v16, %v16
    %v43 = vmul.f32 %v17, %v17
    %v44 = vmul.f32 %v18, %v18
    %v45 = vsel %vm27, %v41, 0.0
    %v46 = vsel %vm27, %v42, 0.0
    %v47 = vadd.f32 %v45, %v46
    %v48 = vsel %vm27, %v43, 0.0
    %v49 = vadd.f32 %v47, %v48
    %v50 = vsel %vm27, %v44, 0.0
    %v51 = vadd.f32 %v49, %v50
    %v52 = vrot.slane %v51, 4
    %v53 = vadd.f32 %v51, %v52
    %v54 = vrot.slane %v53, 2
    %v55 = vadd.f32 %v53, %v54
    %v56 = vrot.slane %v55, 1
    %v57 = vadd.f32 %v55, %v56
    %v58 = vmul.f32 %v19, %v19
    %v59 = vmul.f32 %v20, %v20
    %v60 = vmul.f32 %v21, %v21
    %v61 = vmul.f32 %v22, %v22
    %v62 = vsel %vm27, %v58, 0.0
    %v63 = vsel %vm27, %v59, 0.0
    %v64 = vadd.f32 %v62, %v63
    %v65 = vsel %vm27, %v60, 0.0
    %v66 = vadd.f32 %v64, %v65
    %v67 = vsel %vm27, %v61, 0.0
    %v68 = vadd.f32 %v66, %v67
    %v69 = vrot.slane %v68, 4
    %v70 = vadd.f32 %v68, %v69
    %v71 = vrot.slane %v70, 2
    %v72 = vadd.f32 %v70, %v71
    %v73 = vrot.slane %v72, 1
    %v74 = vadd.f32 %v72, %v73
    %v75 = vmax.f32 %v57, 1e-16
    %v76 = vmax.f32 %v74, 1e-16
    %v77 = vmul.f32 %v75, %v76
    %v78 = vrsqrt.pop %v77
    %v79 = vmul.f32 %v40, %v78
    %v80 = vmul.f32 %v79, 2.5
    %v81 = vadd.f32 %v80, 2.75
    %v82 = vld [vmem:[%s2] sm:$0x1]
    %v83 = vadd.f32 %v81, %v82
    %vm84 = vcmask 57344
    %85 = vst.msk [vmem:[#allocation2] sm:$0x1] %vm84, %v83
    // Predicated region
    $region14: #{factorization_bias_forward.1} parent=1 // pred_check
      _
    $region15: #{factorization_bias_forward.1} parent=1 // pred_check_branch
      %87 = sbr.rel (0) target = $region17
    $region16: #{factorization_bias_forward.1} parent=1 // pred_region
      %s89 = ssub.s32 16, 16
      %90 = vsyncadd [#allocation3], %s89
      %s92 = sshll.u32 [#allocation2], 4
      %s93 = int_to_ptr.vmem [resolvable:$true] %s92
      %95 = dma.vmem_to_hbm [thread:$0]  %s93, 16, %s3, [#allocation3]
    $region17: #{factorization_bias_forward.1} parent=1 // pred_fallthru
      _
    // Predicated region
    $region18: #{factorization_bias_forward.1} parent=1 // pred_check
      _
    $region19: #{factorization_bias_forward.1} parent=1 // pred_check_branch
      %97 = sbr.rel (0) target = $region21
    $region20: #{factorization_bias_forward.1} parent=1 // pred_region
      %98 = dma.done [#allocation3], 16
    $region21: #{factorization_bias_forward.1} parent=1 // pred_fallthru
      _
    %99 = vsyncpa [#allocation3], 1

</llo_original>
